<compile_context>
chip_gen: v7x
topology: tpu7x:2x2x1
jax: 0.10.0
libtpu: 0.0.40
codegen_flags: <defaults>
</compile_context>

<pallas_src>
import functools

import jax
import jax.numpy as jnp
from jax import lax
from jax.experimental import pallas as pl
from jax.experimental.pallas import tpu as pltpu


def _round_up(x, m):
    return (x + m - 1) // m * m


# --------------------------------------------------------------------------------------
# Kernel
# --------------------------------------------------------------------------------------
def attention_kernel(hist_ref, cand_ref, w1h_ref, w1c_ref, b1_ref, w2_ref, e_ref,
                     out_ref, ch_sc, m_sc, l_sc, acc_sc, *, n_valid, needs_mask):
    """Grid = (batch tiles [parallel], clicked-news tiles [arbitrary]).

    hist_ref : (TN, TBg, L)   folded history block (L = G*D lanes, TBg folded rows)
    cand_ref : (TBg, L)       folded candidate block
    w1h/w1c  : (L, G*H)       block-diagonal halves of dnn layer 1
    b1       : (1, G*H)       layer-1 bias, replicated per fold group
    w2       : (G*H, G)       block-diagonal layer 2 (one score per folded batch row)
    e        : (G, L)         lane-expansion matrix (row g = ones on group g's lanes)
    scratch  : ch (TBg, G*H), m/l (TBg, G), acc (TBg, L)  -- persist across the N axis
    """
    n_idx = pl.program_id(1)
    n_last = pl.num_programs(1) - 1

    tn, tbg, lanes = hist_ref.shape
    gh = w1h_ref.shape[1]
    g = w2_ref.shape[1]
    rows = tn * tbg

    @pl.when(n_idx == 0)
    def _init():
        # candidate half of dnn layer 1 (+ bias): constant across the clicked-news axis
        ch_sc[...] = (jnp.dot(cand_ref[...], w1c_ref[...],
                              preferred_element_type=jnp.float32) + b1_ref[...])
        m_sc[...] = jnp.full_like(m_sc, -1e30)
        l_sc[...] = jnp.zeros_like(l_sc)
        acc_sc[...] = jnp.zeros_like(acc_sc)

    hist = hist_ref[...].astype(jnp.float32)                         # (TN, TBg, L)
    if needs_mask:
        # tail N-block: zero padded clicked-news rows so they cannot contribute
        row = lax.broadcasted_iota(jnp.int32, (tn, 1, 1), 0) + n_idx * tn
        valid = row < n_valid
        hist = jnp.where(valid, hist, 0.0)

    # dnn layer 1 (history half) + ReLU: one MXU matmul over the whole (TN*TBg) slab
    hh = jnp.dot(hist.reshape(rows, lanes), w1h_ref[...],
                 preferred_element_type=jnp.float32).reshape(tn, tbg, gh)
    hidden = jnp.maximum(hh + ch_sc[...][None], 0.0)                 # (TN, TBg, G*H)

    # dnn layer 2: block-diagonal matmul -> one score per folded batch row
    s = jnp.dot(hidden.reshape(rows, gh), w2_ref[...],
                preferred_element_type=jnp.float32).reshape(tn, tbg, g)
    if needs_mask:
        s = jnp.where(valid, s, -1e30)

    # online softmax over the clicked-news axis (leading axis of the block)
    m_prev = m_sc[...]                                               # (TBg, G)
    m_new = jnp.maximum(m_prev, jnp.max(s, axis=0))
    alpha = jnp.exp(m_prev - m_new)                                  # rescale factor
    p = jnp.exp(s - m_new[None])                                     # (TN, TBg, G)
    l_sc[...] = alpha * l_sc[...] + jnp.sum(p, axis=0)
    m_sc[...] = m_new

    # expand per-row weights onto the folded feature lanes and accumulate
    if g == 1:
        p_rep = p                                                    # broadcasts over lanes
        alpha_rep = alpha
    else:
        p_rep = jnp.dot(p.reshape(rows, g), e_ref[...],
                        preferred_element_type=jnp.float32).reshape(tn, tbg, lanes)
        alpha_rep = jnp.dot(alpha, e_ref[...], preferred_element_type=jnp.float32)
    acc_sc[...] = alpha_rep * acc_sc[...] + jnp.sum(p_rep * hist, axis=0)

    @pl.when(n_idx == n_last)
    def _finalize():
        inv_l = 1.0 / l_sc[...]                                      # exact; tiny tensor
        if g == 1:
            inv_rep = inv_l
        else:
            inv_rep = jnp.dot(inv_l, e_ref[...], preferred_element_type=jnp.float32)
        out_ref[...] = (acc_sc[...] * inv_rep).astype(out_ref.dtype)


# --------------------------------------------------------------------------------------
# Tiling / VMEM planning
# --------------------------------------------------------------------------------------
def _vmem_plan():
    """Per-generation VMEM limit and tile budget (conservative v7x fallback)."""
    try:
        cap = int(pltpu.get_tpu_info().vmem_capacity_bytes)
    except Exception:
        cap = 64 * 1024 * 1024          # v7x physical VMEM per core
    vmem_limit = min(cap * 3 // 4, 100 * 1024 * 1024)
    tile_budget = vmem_limit * 7 // 10  # headroom for compiler scratch
    return int(vmem_limit), int(tile_budget)


def _choose_fold(B, D):
    """Fold G consecutive batch rows onto the lane axis so loads/stores are lane dense."""
    if D % 128 == 0:
        return 1
    if 128 % D == 0:
        g = 128 // D
        if B >= 16 * g:                 # K=256 layer-1 contraction (v6e/v7x MXU width)
            g *= 2
        return g
    return 1  # TODO(synk): feature widths not dividing 128 fall back to un-folded layout


def _plan_tiles(N, Bg, L, GH, tile_budget):
    """Pick (TBg, TN, tail-mask) from a padded, double-buffered VMEM model."""
    Lp, GHp = _round_up(L, 128), _round_up(GH, 128)
    tbg = min(Bg, 512)
    if tbg < Bg:
        tbg = max(8, (tbg // 8) * 8)
    if Bg >= 16 and tbg >= Bg:
        tbg = _round_up(pl.cdiv(Bg, 2), 8)        # >=2 batch tiles: megacore / v7x cores
    while True:
        rows = _round_up(min(tbg, Bg), 8)                         # sublane-padded rows
        fixed = 2 * 2 * rows * Lp * 4                             # cand + out, x2 buffers
        fixed += rows * (Lp + GHp + 2 * 128) * 4                  # acc / ch / m / l scratch
        fixed += (2 * Lp * GHp + GHp * 128 + 3 * 128 * Lp) * 4 * 2  # resident weights
        per_row = rows * Lp * 4                                   # one clicked-news row
        avail = tile_budget - fixed
        tn = avail // (5 * per_row) if avail > 0 else 0           # x2 hist bufs + ~3x temps
        if tn >= 1 or tbg <= 8:
            break
        tbg = max(8, (tbg // 2 // 8) * 8)
    tbg = min(tbg, Bg)
    tn = int(max(1, min(N, tn)))
    for d in range(tn, 0, -1):                                    # prefer TN | N (no mask)
        if N % d == 0:
            if 2 * d >= tn:
                return tbg, d, False
            break
    return tbg, tn, True


# --------------------------------------------------------------------------------------
# Wrapper
# --------------------------------------------------------------------------------------
def attention_forward(candidate_news_vector, history, w1, b1, w2, b2):
    """candidate_news_vector: (B, D); history: (N, B, D) (native PyTorch layout).
    w1: (2D, H) input-major, b1: (H,), w2: (H, 1), b2 unused (cancels in the softmax).
    Returns user_vector (B, D)."""
    del b2                                  # softmax(s + c) == softmax(s)
    N, B, D = history.shape
    assert candidate_news_vector.shape == (B, D)
    H = w1.shape[1]
    out_dtype = candidate_news_vector.dtype
    f32 = jnp.float32

    G = _choose_fold(B, D)
    L, GH = G * D, G * H
    Bpad = _round_up(B, G)
    Bg = Bpad // G

    hist_f = history.astype(f32)
    cand_f = candidate_news_vector.astype(f32)
    if Bpad != B:
        hist_f = jnp.pad(hist_f, ((0, 0), (0, Bpad - B), (0, 0)))
        cand_f = jnp.pad(cand_f, ((0, Bpad - B), (0, 0)))
    # layout-preserving reshapes: fold G consecutive batch rows onto the lane axis
    hist_f = hist_f.reshape(N, Bg, L)
    cand_f = cand_f.reshape(Bg, L)

    # block-diagonal weights so the folded layer 1 / layer 2 stay single matmuls
    eye_g = jnp.eye(G, dtype=f32)
    w1h = jnp.kron(eye_g, w1[:D].astype(f32))                       # (L, G*H)  history half
    w1c = jnp.kron(eye_g, w1[D:].astype(f32))                       # (L, G*H)  candidate half
    b1r = jnp.tile(jnp.reshape(b1, (1, H)).astype(f32), (1, G))     # (1, G*H)
    w2b = jnp.kron(eye_g, jnp.reshape(w2, (H, 1)).astype(f32))      # (G*H, G)
    e_rep = jnp.kron(eye_g, jnp.ones((1, D), f32))                  # (G, L) lane expansion

    vmem_limit, tile_budget = _vmem_plan()
    TBg, TN, needs_mask = _plan_tiles(N, Bg, L, GH, tile_budget)
    grid = (pl.cdiv(Bg, TBg), pl.cdiv(N, TN))

    kernel = functools.partial(attention_kernel, n_valid=N, needs_mask=needs_mask)

    out_f = pl.pallas_call(
        kernel,
        out_shape=jax.ShapeDtypeStruct((Bg, L), out_dtype),
        grid=grid,
        in_specs=[
            pl.BlockSpec((TN, TBg, L), lambda i, n: (n, i, 0)),     # history (streamed over N)
            pl.BlockSpec((TBg, L), lambda i, n: (i, 0)),            # candidate
            pl.BlockSpec((L, GH), lambda i, n: (0, 0)),             # resident weights
            pl.BlockSpec((L, GH), lambda i, n: (0, 0)),
            pl.BlockSpec((1, GH), lambda i, n: (0, 0)),
            pl.BlockSpec((GH, G), lambda i, n: (0, 0)),
            pl.BlockSpec((G, L), lambda i, n: (0, 0)),
        ],
        out_specs=pl.BlockSpec((TBg, L), lambda i, n: (i, 0)),
        scratch_shapes=[
            pltpu.VMEM((TBg, GH), f32),   # candidate hidden (+ bias)
            pltpu.VMEM((TBg, G), f32),    # running max
            pltpu.VMEM((TBg, G), f32),    # running sum
            pltpu.VMEM((TBg, L), f32),    # running weighted-history accumulator
        ],
        compiler_params=pltpu.CompilerParams(
            dimension_semantics=("parallel", "arbitrary"),
            vmem_limit_bytes=int(vmem_limit),
        ),
    )(hist_f, cand_f, w1h, w1c, b1r, w2b, e_rep)

    user_vector = out_f.reshape(Bpad, D)[:B]
    return user_vector.astype(out_dtype)


# --------------------------------------------------------------------------------------
# Pure-JAX reference (ground truth)
# --------------------------------------------------------------------------------------
def reference_forward(candidate_news_vector, history, w1, b1, w2, b2):
    with jax.default_matmul_precision("highest"):
        N = history.shape[0]
        cand = jnp.broadcast_to(candidate_news_vector[None],
                                (N,) + candidate_news_vector.shape)
        x = jnp.concatenate([history, cand], axis=-1)               # (N, B, 2D)
        h = jnp.maximum(x @ w1 + jnp.reshape(b1, (-1,)), 0.0)       # (N, B, H)
        s = (h @ w2 + jnp.reshape(b2, (-1,))).squeeze(-1)           # (N, B)
        wgt = jax.nn.softmax(s.T, axis=1)                           # (B, N)
        return jnp.einsum("bn,nbd->bd", wgt, history)               # (B, D)


if __name__ == "__main__":
    # synthetic config matching the module's shape arithmetic
    window_sizes = [2, 3]
    num_filters = 16
    num_clicked_news_a_user = 8
    batch = 8

    D = len(window_sizes) * num_filters            # 32
    H = 16

    key = jax.random.PRNGKey(0)
    k1, k2, k3, k4, k5, k6 = jax.random.split(key, 6)
    w1 = jax.random.normal(k1, (2 * D, H), jnp.float32) * 0.1       # Linear(2D, 16), (in, out)
    b1 = jax.random.normal(k2, (H,), jnp.float32) * 0.1
    w2 = jax.random.normal(k3, (H, 1), jnp.float32) * 0.1           # Linear(16, 1)
    b2 = jax.random.normal(k4, (1,), jnp.float32) * 0.1

    candidate_news_vector = jax.random.normal(k5, (batch, D), jnp.float32)
    history = jax.random.normal(k6, (num_clicked_news_a_user, batch, D), jnp.float32)

    user_vector = attention_forward(candidate_news_vector, history, w1, b1, w2, b2)
    user_vector = jax.block_until_ready(user_vector)

    expected = reference_forward(candidate_news_vector, history, w1, b1, w2, b2)
    assert user_vector.shape == (batch, D)
    # exact softmax normalization now; tolerance only covers MXU vs XLA f32 matmul paths
    err = float(jnp.max(jnp.abs(user_vector - expected)))
    assert jnp.allclose(user_vector, expected, atol=2e-3, rtol=2e-3), \
        f"mismatch vs reference (max abs err {err})"

    print("KERNEL_OK")
</pallas_src>

<mosaic_0001>
module attributes {stable_mosaic.version = 11 : i64} {
  func.func @attention_kernel(%arg0: i32, %arg1: i32, %arg2: memref<8x2x128xf32, #tpu.memory_space<vmem>>, %arg3: memref<2x128xf32, #tpu.memory_space<vmem>>, %arg4: memref<128x64xf32, #tpu.memory_space<vmem>>, %arg5: memref<128x64xf32, #tpu.memory_space<vmem>>, %arg6: memref<1x64xf32, #tpu.memory_space<vmem>>, %arg7: memref<64x4xf32, #tpu.memory_space<vmem>>, %arg8: memref<4x128xf32, #tpu.memory_space<vmem>>, %arg9: memref<2x128xf32, #tpu.memory_space<vmem>>, %arg10: memref<2x64xf32, #tpu.memory_space<vmem>>, %arg11: memref<2x4xf32, #tpu.memory_space<vmem>>, %arg12: memref<2x4xf32, #tpu.memory_space<vmem>>, %arg13: memref<2x128xf32, #tpu.memory_space<vmem>>) attributes {dimension_semantics = [#tpu.dimension_semantics<parallel>, #tpu.dimension_semantics<arbitrary>], iteration_bounds = array<i64: 1, 1>, scalar_prefetch = 0 : i64, scratch_operands = 4 : i64, tpu.core_type = #tpu.core_type<tc>, window_params = [{transform_indices = @transform_0, window_bounds = array<i64: 8, 2, 128>}, {transform_indices = @transform_1, window_bounds = array<i64: 2, 128>}, {pipeline_mode = #tpu.pipeline_mode<synchronous>, transform_indices = @transform_2, window_bounds = array<i64: 128, 64>}, {pipeline_mode = #tpu.pipeline_mode<synchronous>, transform_indices = @transform_3, window_bounds = array<i64: 128, 64>}, {pipeline_mode = #tpu.pipeline_mode<synchronous>, transform_indices = @transform_4, window_bounds = array<i64: 1, 64>}, {pipeline_mode = #tpu.pipeline_mode<synchronous>, transform_indices = @transform_5, window_bounds = array<i64: 64, 4>}, {pipeline_mode = #tpu.pipeline_mode<synchronous>, transform_indices = @transform_6, window_bounds = array<i64: 4, 128>}, {transform_indices = @transform_7, window_bounds = array<i64: 2, 128>}]} {
    %c0_i32 = arith.constant 0 : i32
    %0 = arith.cmpi eq, %arg1, %c0_i32 : i32
    %1 = arith.extui %0 : i1 to i32
    %c0_i32_0 = arith.constant 0 : i32
    %2 = arith.cmpi ne, %1, %c0_i32_0 : i32
    scf.if %2 {
      %c0_34 = arith.constant 0 : index
      %c0_35 = arith.constant 0 : index
      %48 = vector.load %arg3[%c0_34, %c0_35] : memref<2x128xf32, #tpu.memory_space<vmem>>, vector<2x128xf32>
      %c0_36 = arith.constant 0 : index
      %c0_37 = arith.constant 0 : index
      %49 = vector.load %arg5[%c0_36, %c0_37] : memref<128x64xf32, #tpu.memory_space<vmem>>, vector<128x64xf32>
      %cst_38 = arith.constant dense<0.000000e+00> : vector<2x64xf32>
      %50 = tpu.matmul %48, %49, %cst_38 {dimension_numbers = #tpu.dot_dimension_numbers<[1], [0], [0], [1], [0, 0, 1, 1], [], []>} : vector<2x128xf32>, vector<128x64xf32>, vector<2x64xf32> -> vector<2x64xf32>
      %c0_39 = arith.constant 0 : index
      %c0_40 = arith.constant 0 : index
      %51 = vector.load %arg6[%c0_39, %c0_40] : memref<1x64xf32, #tpu.memory_space<vmem>>, vector<1x64xf32>
      %52 = vector.broadcast %51 : vector<1x64xf32> to vector<2x64xf32>
      %53 = arith.addf %50, %52 : vector<2x64xf32>
      %c0_41 = arith.constant 0 : index
      %c0_42 = arith.constant 0 : index
      %54 = vector.load %arg10[%c0_41, %c0_42] : memref<2x64xf32, #tpu.memory_space<vmem>>, vector<2x64xf32>
      tpu.vector_store %arg10[%c0_41, %c0_42], %53 {strides = array<i32>} : memref<2x64xf32, #tpu.memory_space<vmem>>, vector<2x64xf32>,
      %cst_43 = arith.constant -1.000000e+30 : f32
      %55 = vector.broadcast %cst_43 : f32 to vector<2x4xf32>
      %c0_44 = arith.constant 0 : index
      %c0_45 = arith.constant 0 : index
      %56 = vector.load %arg11[%c0_44, %c0_45] : memref<2x4xf32, #tpu.memory_space<vmem>>, vector<2x4xf32>
      tpu.vector_store %arg11[%c0_44, %c0_45], %55 {strides = array<i32>} : memref<2x4xf32, #tpu.memory_space<vmem>>, vector<2x4xf32>,
      %cst_46 = arith.constant 0.000000e+00 : f32
      %57 = vector.broadcast %cst_46 : f32 to vector<2x4xf32>
      %c0_47 = arith.constant 0 : index
      %c0_48 = arith.constant 0 : index
      %58 = vector.load %arg12[%c0_47, %c0_48] : memref<2x4xf32, #tpu.memory_space<vmem>>, vector<2x4xf32>
      tpu.vector_store %arg12[%c0_47, %c0_48], %57 {strides = array<i32>} : memref<2x4xf32, #tpu.memory_space<vmem>>, vector<2x4xf32>,
      %cst_49 = arith.constant 0.000000e+00 : f32
      %59 = vector.broadcast %cst_49 : f32 to vector<2x128xf32>
      %c0_50 = arith.constant 0 : index
      %c0_51 = arith.constant 0 : index
      %60 = vector.load %arg13[%c0_50, %c0_51] : memref<2x128xf32, #tpu.memory_space<vmem>>, vector<2x128xf32>
      tpu.vector_store %arg13[%c0_50, %c0_51], %59 {strides = array<i32>} : memref<2x128xf32, #tpu.memory_space<vmem>>, vector<2x128xf32>,
    } else {
    }
    %c0 = arith.constant 0 : index
    %c0_1 = arith.constant 0 : index
    %c0_2 = arith.constant 0 : index
    %3 = vector.load %arg2[%c0, %c0_1, %c0_2] : memref<8x2x128xf32, #tpu.memory_space<vmem>>, vector<8x2x128xf32>
    %4 = vector.shape_cast %3 : vector<8x2x128xf32> to vector<16x128xf32>
    %c0_3 = arith.constant 0 : index
    %c0_4 = arith.constant 0 : index
    %5 = vector.load %arg4[%c0_3, %c0_4] : memref<128x64xf32, #tpu.memory_space<vmem>>, vector<128x64xf32>
    %cst = arith.constant dense<0.000000e+00> : vector<16x64xf32>
    %6 = tpu.matmul %4, %5, %cst {dimension_numbers = #tpu.dot_dimension_numbers<[1], [0], [0], [1], [0, 0, 1, 1], [], []>} : vector<16x128xf32>, vector<128x64xf32>, vector<16x64xf32> -> vector<16x64xf32>
    %7 = vector.shape_cast %6 : vector<16x64xf32> to vector<8x2x64xf32>
    %c0_5 = arith.constant 0 : index
    %c0_6 = arith.constant 0 : index
    %8 = vector.load %arg10[%c0_5, %c0_6] : memref<2x64xf32, #tpu.memory_space<vmem>>, vector<2x64xf32>
    %9 = vector.shape_cast %8 : vector<2x64xf32> to vector<1x2x64xf32>
    %10 = vector.broadcast %9 : vector<1x2x64xf32> to vector<8x2x64xf32>
    %11 = arith.addf %7, %10 : vector<8x2x64xf32>
    %cst_7 = arith.constant 0.000000e+00 : f32
    %12 = vector.broadcast %cst_7 : f32 to vector<8x2x64xf32>
    %13 = arith.maximumf %11, %12 : vector<8x2x64xf32>
    %14 = vector.shape_cast %13 : vector<8x2x64xf32> to vector<16x64xf32>
    %c0_8 = arith.constant 0 : index
    %c0_9 = arith.constant 0 : index
    %15 = vector.load %arg7[%c0_8, %c0_9] : memref<64x4xf32, #tpu.memory_space<vmem>>, vector<64x4xf32>
    %cst_10 = arith.constant dense<0.000000e+00> : vector<16x4xf32>
    %16 = tpu.matmul %14, %15, %cst_10 {dimension_numbers = #tpu.dot_dimension_numbers<[1], [0], [0], [1], [0, 0, 1, 1], [], []>} : vector<16x64xf32>, vector<64x4xf32>, vector<16x4xf32> -> vector<16x4xf32>
    %17 = vector.shape_cast %16 : vector<16x4xf32> to vector<8x2x4xf32>
    %c0_11 = arith.constant 0 : index
    %c0_12 = arith.constant 0 : index
    %18 = vector.load %arg11[%c0_11, %c0_12] : memref<2x4xf32, #tpu.memory_space<vmem>>, vector<2x4xf32>
    %cst_13 = arith.constant dense<0xFF800000> : vector<2x4xf32>
    %19 = vector.multi_reduction <maximumf>, %17, %cst_13 [0] : vector<8x2x4xf32> to vector<2x4xf32>
    %20 = arith.maximumf %18, %19 : vector<2x4xf32>
    %21 = arith.subf %18, %20 : vector<2x4xf32>
    %22 = math.exp %21 : vector<2x4xf32>
    %23 = vector.shape_cast %20 : vector<2x4xf32> to vector<1x2x4xf32>
    %24 = vector.broadcast %23 : vector<1x2x4xf32> to vector<8x2x4xf32>
    %25 = arith.subf %17, %24 : vector<8x2x4xf32>
    %26 = math.exp %25 : vector<8x2x4xf32>
    %c0_14 = arith.constant 0 : index
    %c0_15 = arith.constant 0 : index
    %27 = vector.load %arg12[%c0_14, %c0_15] : memref<2x4xf32, #tpu.memory_space<vmem>>, vector<2x4xf32>
    %28 = arith.mulf %22, %27 : vector<2x4xf32>
    %cst_16 = arith.constant dense<0.000000e+00> : vector<2x4xf32>
    %29 = vector.multi_reduction <add>, %26, %cst_16 [0] : vector<8x2x4xf32> to vector<2x4xf32>
    %30 = arith.addf %28, %29 : vector<2x4xf32>
    %c0_17 = arith.constant 0 : index
    %c0_18 = arith.constant 0 : index
    %31 = vector.load %arg12[%c0_17, %c0_18] : memref<2x4xf32, #tpu.memory_space<vmem>>, vector<2x4xf32>
    tpu.vector_store %arg12[%c0_17, %c0_18], %30 {strides = array<i32>} : memref<2x4xf32, #tpu.memory_space<vmem>>, vector<2x4xf32>,
    %c0_19 = arith.constant 0 : index
    %c0_20 = arith.constant 0 : index
    %32 = vector.load %arg11[%c0_19, %c0_20] : memref<2x4xf32, #tpu.memory_space<vmem>>, vector<2x4xf32>
    tpu.vector_store %arg11[%c0_19, %c0_20], %20 {strides = array<i32>} : memref<2x4xf32, #tpu.memory_space<vmem>>, vector<2x4xf32>,
    %33 = vector.shape_cast %26 : vector<8x2x4xf32> to vector<16x4xf32>
    %c0_21 = arith.constant 0 : index
    %c0_22 = arith.constant 0 : index
    %34 = vector.load %arg8[%c0_21, %c0_22] : memref<4x128xf32, #tpu.memory_space<vmem>>, vector<4x128xf32>
    %cst_23 = arith.constant dense<0.000000e+00> : vector<16x128xf32>
    %35 = tpu.matmul %33, %34, %cst_23 {dimension_numbers = #tpu.dot_dimension_numbers<[1], [0], [0], [1], [0, 0, 1, 1], [], []>} : vector<16x4xf32>, vector<4x128xf32>, vector<16x128xf32> -> vector<16x128xf32>
    %36 = vector.shape_cast %35 : vector<16x128xf32> to vector<8x2x128xf32>
    %c0_24 = arith.constant 0 : index
    %c0_25 = arith.constant 0 : index
    %37 = vector.load %arg8[%c0_24, %c0_25] : memref<4x128xf32, #tpu.memory_space<vmem>>, vector<4x128xf32>
    %cst_26 = arith.constant dense<0.000000e+00> : vector<2x128xf32>
    %38 = tpu.matmul %22, %37, %cst_26 {dimension_numbers = #tpu.dot_dimension_numbers<[1], [0], [0], [1], [0, 0, 1, 1], [], []>} : vector<2x4xf32>, vector<4x128xf32>, vector<2x128xf32> -> vector<2x128xf32>
    %c0_27 = arith.constant 0 : index
    %c0_28 = arith.constant 0 : index
    %39 = vector.load %arg13[%c0_27, %c0_28] : memref<2x128xf32, #tpu.memory_space<vmem>>, vector<2x128xf32>
    %40 = arith.mulf %38, %39 : vector<2x128xf32>
    %41 = arith.mulf %36, %3 : vector<8x2x128xf32>
    %cst_29 = arith.constant dense<0.000000e+00> : vector<2x128xf32>
    %42 = vector.multi_reduction <add>, %41, %cst_29 [0] : vector<8x2x128xf32> to vector<2x128xf32>
    %43 = arith.addf %40, %42 : vector<2x128xf32>
    %c0_30 = arith.constant 0 : index
    %c0_31 = arith.constant 0 : index
    %44 = vector.load %arg13[%c0_30, %c0_31] : memref<2x128xf32, #tpu.memory_space<vmem>>, vector<2x128xf32>
    tpu.vector_store %arg13[%c0_30, %c0_31], %43 {strides = array<i32>} : memref<2x128xf32, #tpu.memory_space<vmem>>, vector<2x128xf32>,
    %c0_i32_32 = arith.constant 0 : i32
    %45 = arith.cmpi eq, %arg1, %c0_i32_32 : i32
    %46 = arith.extui %45 : i1 to i32
    %c0_i32_33 = arith.constant 0 : i32
    %47 = arith.cmpi ne, %46, %c0_i32_33 : i32
    scf.if %47 {
      %c0_34 = arith.constant 0 : index
      %c0_35 = arith.constant 0 : index
      %48 = vector.load %arg12[%c0_34, %c0_35] : memref<2x4xf32, #tpu.memory_space<vmem>>, vector<2x4xf32>
      %cst_36 = arith.constant 1.000000e+00 : f32
      %49 = vector.broadcast %cst_36 : f32 to vector<2x4xf32>
      %50 = arith.divf %49, %48 : vector<2x4xf32>
      %c0_37 = arith.constant 0 : index
      %c0_38 = arith.constant 0 : index
      %51 = vector.load %arg8[%c0_37, %c0_38] : memref<4x128xf32, #tpu.memory_space<vmem>>, vector<4x128xf32>
      %cst_39 = arith.constant dense<0.000000e+00> : vector<2x128xf32>
      %52 = tpu.matmul %50, %51, %cst_39 {dimension_numbers = #tpu.dot_dimension_numbers<[1], [0], [0], [1], [0, 0, 1, 1], [], []>} : vector<2x4xf32>, vector<4x128xf32>, vector<2x128xf32> -> vector<2x128xf32>
      %c0_40 = arith.constant 0 : index
      %c0_41 = arith.constant 0 : index
      %53 = vector.load %arg13[%c0_40, %c0_41] : memref<2x128xf32, #tpu.memory_space<vmem>>, vector<2x128xf32>
      %54 = arith.mulf %53, %52 : vector<2x128xf32>
      %c0_42 = arith.constant 0 : index
      %c0_43 = arith.constant 0 : index
      %55 = vector.load %arg9[%c0_42, %c0_43] : memref<2x128xf32, #tpu.memory_space<vmem>>, vector<2x128xf32>
      tpu.vector_store %arg9[%c0_42, %c0_43], %54 {strides = array<i32>} : memref<2x128xf32, #tpu.memory_space<vmem>>, vector<2x128xf32>,
    } else {
    }
    return
  }
  func.func @transform_0(%arg0: i32, %arg1: i32) -> (i32, i32, i32) {
    %c0_i32 = arith.constant 0 : i32
    %c0_i32_0 = arith.constant 0 : i32
    return %arg1, %arg0, %c0_i32 : i32, i32, i32
  }
  func.func @transform_1(%arg0: i32, %arg1: i32) -> (i32, i32) {
    %c0_i32 = arith.constant 0 : i32
    %c0_i32_0 = arith.constant 0 : i32
    return %arg0, %c0_i32 : i32, i32
  }
  func.func @transform_2(%arg0: i32, %arg1: i32) -> (i32, i32) {
    %c0_i32 = arith.constant 0 : i32
    %c0_i32_0 = arith.constant 0 : i32
    %c0_i32_1 = arith.constant 0 : i32
    return %c0_i32, %c0_i32_0 : i32, i32
  }
  func.func @transform_3(%arg0: i32, %arg1: i32) -> (i32, i32) {
    %c0_i32 = arith.constant 0 : i32
    %c0_i32_0 = arith.constant 0 : i32
    %c0_i32_1 = arith.constant 0 : i32
    return %c0_i32, %c0_i32_0 : i32, i32
  }
  func.func @transform_4(%arg0: i32, %arg1: i32) -> (i32, i32) {
    %c0_i32 = arith.constant 0 : i32
    %c0_i32_0 = arith.constant 0 : i32
    %c0_i32_1 = arith.constant 0 : i32
    return %c0_i32, %c0_i32_0 : i32, i32
  }
  func.func @transform_5(%arg0: i32, %arg1: i32) -> (i32, i32) {
    %c0_i32 = arith.constant 0 : i32
    %c0_i32_0 = arith.constant 0 : i32
    %c0_i32_1 = arith.constant 0 : i32
    return %c0_i32, %c0_i32_0 : i32, i32
  }
  func.func @transform_6(%arg0: i32, %arg1: i32) -> (i32, i32) {
    %c0_i32 = arith.constant 0 : i32
    %c0_i32_0 = arith.constant 0 : i32
    %c0_i32_1 = arith.constant 0 : i32
    return %c0_i32, %c0_i32_0 : i32, i32
  }
  func.func @transform_7(%arg0: i32, %arg1: i32) -> (i32, i32) {
    %c0_i32 = arith.constant 0 : i32
    %c0_i32_0 = arith.constant 0 : i32
    return %arg0, %c0_i32 : i32, i32
  }
}

</mosaic_0001>

<llo_original>
// kernel: tpu_custom_call.1
$region0: #{tpu_custom_call.1}
  #allocation0 [shape = 'u32[]', space=smem, size = 0x4, offset = 0x4, fixed_abs, tag = 'smem constant byte address 0x4 - core index']
  #allocation1 [shape = 'u32[144,128]{1,0:T(1,128)}', space=vmem, size = 0x12000, scoped, tag = 'internal scratch']
  #allocation2 [shape = 'f32[2,64]{1,0:T(2,128)}', space=vmem, size = 0x400, scoped, tag = 'scratch operand']
  #allocation3 [shape = 'f32[2,4]{1,0:T(2,128)}', space=vmem, size = 0x400, scoped, tag = 'scratch operand']
  #allocation4 [shape = 'f32[2,4]{1,0:T(2,128)}', space=vmem, size = 0x400, scoped, tag = 'scratch operand']
  #allocation5 [shape = 'f32[2,128]{1,0:T(2,128)}', space=vmem, size = 0x400, scoped, tag = 'scratch operand']
  %s0 = inlined_call_operand.vmem [shape: f32[8,2,128], index: 0, kind: input, shape index: {}]
  %s1 = inlined_call_operand.vmem [shape: f32[2,128], index: 1, kind: input, shape index: {}]
  %s2 = inlined_call_operand.vmem [shape: f32[128,64], index: 2, kind: input, shape index: {}]
  %s3 = inlined_call_operand.vmem [shape: f32[128,64], index: 3, kind: input, shape index: {}]
  %s4 = inlined_call_operand.vmem [shape: f32[1,64], index: 4, kind: input, shape index: {}]
  %s5 = inlined_call_operand.vmem [shape: f32[64,4], index: 5, kind: input, shape index: {}]
  %s6 = inlined_call_operand.vmem [shape: f32[4,128], index: 6, kind: input, shape index: {}]
  %s7 = inlined_call_operand.hbm [shape: f32[2,128], index: 7, kind: output, shape index: {}]
  %s8 = sld [smem:[#allocation0]]
  $region46: #{tpu_custom_call.1} parent=0
    _
  %s10 = ssub.s32 1, %s8
  %s11 = scalar_select 0, %s10, %s8
  $region1: #{tpu_custom_call.1} parent=0
    #allocation6 [shape = 'u8[1024]{0}', space=vmem, size = 0x400, scoped, tag = 'output window, operand 0, single buffered']
    #allocation7 [shape = 's32[1]{0}', space=sflag, size = 0x4, scoped, tag = 'scoped memory for tpu_custom_call.1']
    %12 = vsyncpa [#allocation7], 0
    // Predicated region
    $region2: #{tpu_custom_call.1} parent=1 // pred_check
      _
    $region3: #{tpu_custom_call.1} parent=1 // pred_check_branch
      %14 = sbr.rel (0) target = $region5
    $region4: #{tpu_custom_call.1} parent=1 // pred_region
      _
    $region5: #{tpu_custom_call.1} parent=1 // pred_fallthru
      _
    // Predicated region
    $region6: #{tpu_custom_call.1} parent=1 // pred_check
      _
    $region7: #{tpu_custom_call.1} parent=1 // pred_check_branch
      %16 = sbr.rel (0) target = $region9
    $region8: #{tpu_custom_call.1} parent=1 // pred_region
      _
    $region9: #{tpu_custom_call.1} parent=1 // pred_fallthru
      _
    // Predicated region
    $region10: #{tpu_custom_call.1} parent=1 // pred_check
      _
    $region11: #{tpu_custom_call.1} parent=1 // pred_check_branch
      %18 = sbr.rel (0) target = $region13
    $region12: #{tpu_custom_call.1} parent=1 // pred_region
      _
    $region13: #{tpu_custom_call.1} parent=1 // pred_fallthru
      _
    // Predicated region
    $region14: #{tpu_custom_call.1} parent=1 // pred_check
      _
    $region15: #{tpu_custom_call.1} parent=1 // pred_check_branch
      %20 = sbr.rel (0) target = $region17
    $region16: #{tpu_custom_call.1} parent=1 // pred_region
      _
    $region17: #{tpu_custom_call.1} parent=1 // pred_fallthru
      _
    // Predicated region
    $region18: #{tpu_custom_call.1} parent=1 // pred_check
      _
    $region19: #{tpu_custom_call.1} parent=1 // pred_check_branch
      %22 = sbr.rel (0) target = $region21
    $region20: #{tpu_custom_call.1} parent=1 // pred_region
      _
    $region21: #{tpu_custom_call.1} parent=1 // pred_fallthru
      _
    // Predicated region
    $region22: #{tpu_custom_call.1} parent=1 // pred_check
      _
    $region23: #{tpu_custom_call.1} parent=1 // pred_check_branch
      %24 = sbr.rel (0) target = $region25
    $region24: #{tpu_custom_call.1} parent=1 // pred_region
      _
    $region25: #{tpu_custom_call.1} parent=1 // pred_fallthru
      _
    // Predicated region
    $region26: #{tpu_custom_call.1} parent=1 // pred_check
      _
    $region27: #{tpu_custom_call.1} parent=1 // pred_check_branch
      %26 = sbr.rel (0) target = $region29
    $region28: #{tpu_custom_call.1} parent=1 // pred_region
      _
    $region29: #{tpu_custom_call.1} parent=1 // pred_fallthru
      _
    %p27 = scmp.eq.s32.totalorder 0, 0
    // Predicated region
    $region30: #{tpu_custom_call.1} parent=1 // pred_check
      %p28 = pneg %p27
    $region31: #{tpu_custom_call.1} parent=1 // pred_check_branch
      %30 = sbr.rel (%p28) target = $region33
    $region32: #{tpu_custom_call.1} parent=1 // pred_region
      %v31 = vld [vmem:[%s1] sm:$0x3]
      %v32 = vld [vmem:[%s3] sm:$0xff]
      %v33 = vld [vmem:[%s3 + $0x8] sm:$0xff]
      %v34 = vld [vmem:[%s3 + $0x10] sm:$0xff]
      %v35 = vld [vmem:[%s3 + $0x18] sm:$0xff]
      %v36 = vld [vmem:[%s3 + $0x20] sm:$0xff]
      %v37 = vld [vmem:[%s3 + $0x28] sm:$0xff]
      %v38 = vld [vmem:[%s3 + $0x30] sm:$0xff]
      %v39 = vld [vmem:[%s3 + $0x38] sm:$0xff]
      %v40 = vld [vmem:[%s3 + $0x40] sm:$0xff]
      %v41 = vld [vmem:[%s3 + $0x48] sm:$0xff]
      %v42 = vld [vmem:[%s3 + $0x50] sm:$0xff]
      %v43 = vld [vmem:[%s3 + $0x58] sm:$0xff]
      %v44 = vld [vmem:[%s3 + $0x60] sm:$0xff]
      %v45 = vld [vmem:[%s3 + $0x68] sm:$0xff]
      %v46 = vld [vmem:[%s3 + $0x70] sm:$0xff]
      %v47 = vld [vmem:[%s3 + $0x78] sm:$0xff]
      %v48 = vld [vmem:[%s4] sm:$0x1]
      %v50 = vlaneseq
      %v51 = vshrl.u32 %v50, 7
      %v52 = vsub.s32 0, %v51
      %v53 = vrot.slane %v48, %v52
      %55 = vmatprep.subr.mxu0 0.0
      %56 = vmatpush1.msra.mxu0 %v32
      %57 = vmatprep.subr.mxu0 0.0
      %58 = vmatpush1.msra.mxu0 %v33
      %59 = vmatprep.subr.mxu0 0.0
      %60 = vmatpush1.msra.mxu0 %v34
      %61 = vmatprep.subr.mxu0 0.0
      %62 = vmatpush1.msra.mxu0 %v35
      %63 = vmatprep.subr.mxu0 0.0
      %64 = vmatpush1.msra.mxu0 %v36
      %65 = vmatprep.subr.mxu0 0.0
      %66 = vmatpush1.msra.mxu0 %v37
      %67 = vmatprep.subr.mxu0 0.0
      %68 = vmatpush1.msra.mxu0 %v38
      %69 = vmatprep.subr.mxu0 0.0
      %70 = vmatpush1.msra.mxu0 %v39
      %71 = vmatprep.subr.mxu0 0.0
      %72 = vmatpush1.msra.mxu0 %v40
      %73 = vmatprep.subr.mxu0 0.0
      %74 = vmatpush1.msra.mxu0 %v41
      %75 = vmatprep.subr.mxu0 0.0
      %76 = vmatpush1.msra.mxu0 %v42
      %77 = vmatprep.subr.mxu0 0.0
      %78 = vmatpush1.msra.mxu0 %v43
      %79 = vmatprep.subr.mxu0 0.0
      %80 = vmatpush1.msra.mxu0 %v44
      %81 = vmatprep.subr.mxu0 0.0
      %82 = vmatpush1.msra.mxu0 %v45
      %83 = vmatprep.subr.mxu0 0.0
      %84 = vmatpush1.msra.mxu0 %v46
      %85 = vmatprep.subr.mxu0 0.0
      %86 = vmatpush1.msra.mxu0 %v47
      %87 = vmatprep.subr.mxu0 0.0
      %88 = vmatpush1.msra.mxu0 0.0
      %89 = vmatprep.subr.mxu0 0.0
      %90 = vmatpush1.msra.mxu0 0.0
      %91 = vmatprep.subr.mxu0 0.0
      %92 = vmatpush1.msra.mxu0 0.0
      %93 = vmatprep.subr.mxu0 0.0
      %94 = vmatpush1.msra.mxu0 0.0
      %95 = vmatprep.subr.mxu0 0.0
      %96 = vmatpush1.msra.mxu0 0.0
      %97 = vmatprep.subr.mxu0 0.0
      %98 = vmatpush1.msra.mxu0 0.0
      %99 = vmatprep.subr.mxu0 0.0
      %100 = vmatpush1.msra.mxu0 0.0
      %101 = vmatprep.subr.mxu0 0.0
      %102 = vmatpush1.msra.mxu0 0.0
      %103 = vmatprep.subr.mxu0 0.0
      %104 = vmatpush1.msra.mxu0 0.0
      %105 = vmatprep.subr.mxu0 0.0
      %106 = vmatpush1.msra.mxu0 0.0
      %107 = vmatprep.subr.mxu0 0.0
      %108 = vmatpush1.msra.mxu0 0.0
      %109 = vmatprep.subr.mxu0 0.0
      %110 = vmatpush1.msra.mxu0 0.0
      %111 = vmatprep.subr.mxu0 0.0
      %112 = vmatpush1.msra.mxu0 0.0
      %113 = vmatprep.subr.mxu0 0.0
      %114 = vmatpush1.msra.mxu0 0.0
      %115 = vmatprep.subr.mxu0 0.0
      %116 = vmatpush1.msra.mxu0 0.0
      %117 = vmatprep.subr.mxu0 0.0
      %118 = vmatpush1.msra.mxu0 0.0
      %119 = vmatprep.mubr.f32.mxu0 0.0
      %120 = vmatmul.mubr.f32.gmra.mrb[0].mxu0 %v31
      %v121 = vpop.f32.mrb[0].mxu0
      %v122 = vadd.f32 %v53, %v121
      %v123 = vpop.f32.mrb[0].mxu0
      %124 = vdwg.mxu0
      %vm125 = vcmask 517120
      %126 = vst.msk [vmem:[#allocation2] sm:$0x3] %vm125, %v122
      %vm127 = vcmask 25600
      %128 = vst.msk [vmem:[#allocation3] sm:$0x3] %vm127, -1e+30
      %129 = vst.msk [vmem:[#allocation4] sm:$0x3] %vm127, 0.0
      %130 = vst [vmem:[#allocation5] sm:$0x3] 0.0
    $region33: #{tpu_custom_call.1} parent=1 // pred_fallthru
      _
    %v131 = vld [vmem:[%s0] sm:$0x3]
    %v132 = vld [vmem:[%s0 + $0x2] sm:$0x3]
    %v133 = vld [vmem:[%s0 + $0x4] sm:$0x3]
    %v134 = vld [vmem:[%s0 + $0x6] sm:$0x3]
    %v135 = vld [vmem:[%s0 + $0x8] sm:$0x3]
    %v136 = vld [vmem:[%s0 + $0xa] sm:$0x3]
    %v137 = vld [vmem:[%s0 + $0xc] sm:$0x3]
    %v138 = vld [vmem:[%s0 + $0xe] sm:$0x3]
    %v139 = vld [vmem:[%s2] sm:$0xff]
    %v140 = vld [vmem:[%s2 + $0x8] sm:$0xff]
    %v141 = vld [vmem:[%s2 + $0x10] sm:$0xff]
    %v142 = vld [vmem:[%s2 + $0x18] sm:$0xff]
    %v143 = vld [vmem:[%s2 + $0x20] sm:$0xff]
    %v144 = vld [vmem:[%s2 + $0x28] sm:$0xff]
    %v145 = vld [vmem:[%s2 + $0x30] sm:$0xff]
    %v146 = vld [vmem:[%s2 + $0x38] sm:$0xff]
    %v147 = vld [vmem:[%s2 + $0x40] sm:$0xff]
    %v148 = vld [vmem:[%s2 + $0x48] sm:$0xff]
    %v149 = vld [vmem:[%s2 + $0x50] sm:$0xff]
    %v150 = vld [vmem:[%s2 + $0x58] sm:$0xff]
    %v151 = vld [vmem:[%s2 + $0x60] sm:$0xff]
    %v152 = vld [vmem:[%s2 + $0x68] sm:$0xff]
    %v153 = vld [vmem:[%s2 + $0x70] sm:$0xff]
    %v154 = vld [vmem:[%s2 + $0x78] sm:$0xff]
    %v163 = vcombine.low %v131, %v132
    %v164 = vcombine.low %v133, %v134
    %v166 = vunpack.c.l.s4 1983009808
    %v167 = vunpack.c.0.s8 %v166
    %v168 = vlaneseq
    %v169 = vshrl.u32 %v168, 7
    %v170 = vsub.s32 %v167, %v169
    %v171 = vrot.slane %v163, %v170
    %v173 = vunpack.c.l.s4 1983009808
    %v174 = vunpack.c.0.s8 %v173
    %v175 = vlaneseq
    %v176 = vshrl.u32 %v175, 7
    %v177 = vsub.s32 %v174, %v176
    %v178 = vrot.slane %v164, %v177
    %v179 = vcombine.low %v171, %v178
    %v180 = vcombine.low %v135, %v136
    %v181 = vcombine.low %v137, %v138
    %v183 = vunpack.c.l.s4 1983009808
    %v184 = vunpack.c.0.s8 %v183
    %v185 = vlaneseq
    %v186 = vshrl.u32 %v185, 7
    %v187 = vsub.s32 %v184, %v186
    %v188 = vrot.slane %v180, %v187
    %v190 = vunpack.c.l.s4 1983009808
    %v191 = vunpack.c.0.s8 %v190
    %v192 = vlaneseq
    %v193 = vshrl.u32 %v192, 7
    %v194 = vsub.s32 %v191, %v193
    %v195 = vrot.slane %v181, %v194
    %v196 = vcombine.low %v188, %v195
    %199 = vmatprep.subr.mxu0 0.0
    %200 = vmatpush1.msra.mxu0 %v139
    %201 = vmatprep.subr.mxu0 0.0
    %202 = vmatpush1.msra.mxu0 %v140
    %203 = vmatprep.subr.mxu0 0.0
    %204 = vmatpush1.msra.mxu0 %v141
    %205 = vmatprep.subr.mxu0 0.0
    %206 = vmatpush1.msra.mxu0 %v142
    %207 = vmatprep.subr.mxu0 0.0
    %208 = vmatpush1.msra.mxu0 %v143
    %209 = vmatprep.subr.mxu0 0.0
    %210 = vmatpush1.msra.mxu0 %v144
    %211 = vmatprep.subr.mxu0 0.0
    %212 = vmatpush1.msra.mxu0 %v145
    %213 = vmatprep.subr.mxu0 0.0
    %214 = vmatpush1.msra.mxu0 %v146
    %215 = vmatprep.subr.mxu0 0.0
    %216 = vmatpush1.msra.mxu0 %v147
    %217 = vmatprep.subr.mxu0 0.0
    %218 = vmatpush1.msra.mxu0 %v148
    %219 = vmatprep.subr.mxu0 0.0
    %220 = vmatpush1.msra.mxu0 %v149
    %221 = vmatprep.subr.mxu0 0.0
    %222 = vmatpush1.msra.mxu0 %v150
    %223 = vmatprep.subr.mxu0 0.0
    %224 = vmatpush1.msra.mxu0 %v151
    %225 = vmatprep.subr.mxu0 0.0
    %226 = vmatpush1.msra.mxu0 %v152
    %227 = vmatprep.subr.mxu0 0.0
    %228 = vmatpush1.msra.mxu0 %v153
    %229 = vmatprep.subr.mxu0 0.0
    %230 = vmatpush1.msra.mxu0 %v154
    %231 = vmatprep.subr.mxu0 0.0
    %232 = vmatpush1.msra.mxu0 0.0
    %233 = vmatprep.subr.mxu0 0.0
    %234 = vmatpush1.msra.mxu0 0.0
    %235 = vmatprep.subr.mxu0 0.0
    %236 = vmatpush1.msra.mxu0 0.0
    %237 = vmatprep.subr.mxu0 0.0
    %238 = vmatpush1.msra.mxu0 0.0
    %239 = vmatprep.subr.mxu0 0.0
    %240 = vmatpush1.msra.mxu0 0.0
    %241 = vmatprep.subr.mxu0 0.0
    %242 = vmatpush1.msra.mxu0 0.0
    %243 = vmatprep.subr.mxu0 0.0
    %244 = vmatpush1.msra.mxu0 0.0
    %245 = vmatprep.subr.mxu0 0.0
    %246 = vmatpush1.msra.mxu0 0.0
    %247 = vmatprep.subr.mxu0 0.0
    %248 = vmatpush1.msra.mxu0 0.0
    %249 = vmatprep.subr.mxu0 0.0
    %250 = vmatpush1.msra.mxu0 0.0
    %251 = vmatprep.subr.mxu0 0.0
    %252 = vmatpush1.msra.mxu0 0.0
    %253 = vmatprep.subr.mxu0 0.0
    %254 = vmatpush1.msra.mxu0 0.0
    %255 = vmatprep.subr.mxu0 0.0
    %256 = vmatpush1.msra.mxu0 0.0
    %257 = vmatprep.subr.mxu0 0.0
    %258 = vmatpush1.msra.mxu0 0.0
    %259 = vmatprep.subr.mxu0 0.0
    %260 = vmatpush1.msra.mxu0 0.0
    %261 = vmatprep.subr.mxu0 0.0
    %262 = vmatpush1.msra.mxu0 0.0
    %263 = vmatprep.mubr.f32.mxu0 0.0
    %264 = vmatmul.mubr.f32.gmra.mrb[0].mxu0 %v179
    %v265 = vpop.f32.mrb[0].mxu0
    %v266 = vadd.f32 0.0, %v265
    %v267 = vpop.f32.mrb[0].mxu0
    %268 = vmatprep.mubr.f32.mxu0 0.0
    %269 = vmatmul.mubr.f32.gmra.mrb[0].mxu0 %v196
    %v270 = vpop.f32.mrb[0].mxu0
    %v271 = vadd.f32 0.0, %v270
    %v272 = vpop.f32.mrb[0].mxu0
    %273 = vdwg.mxu0
    %v276 = vcombine.high %v266, %v266
    %v278 = vunpack.c.l.s4 1983009808
    %v279 = vunpack.c.0.s8 %v278
    %v280 = vlaneseq
    %v281 = vshrl.u32 %v280, 7
    %v282 = vsub.s32 %v279, %v281
    %v283 = vrot.slane %v266, %v282
    %v285 = vunpack.c.l.s4 1983009808
    %v286 = vunpack.c.0.s8 %v285
    %v287 = vlaneseq
    %v288 = vshrl.u32 %v287, 7
    %v289 = vsub.s32 %v286, %v288
    %v290 = vrot.slane %v276, %v289
    %v291 = vcombine.high %v283, %v283
    %v292 = vcombine.high %v290, %v290
    %v293 = vcombine.high %v271, %v271
    %v295 = vunpack.c.l.s4 1983009808
    %v296 = vunpack.c.0.s8 %v295
    %v297 = vlaneseq
    %v298 = vshrl.u32 %v297, 7
    %v299 = vsub.s32 %v296, %v298
    %v300 = vrot.slane %v271, %v299
    %v302 = vunpack.c.l.s4 1983009808
    %v303 = vunpack.c.0.s8 %v302
    %v304 = vlaneseq
    %v305 = vshrl.u32 %v304, 7
    %v306 = vsub.s32 %v303, %v305
    %v307 = vrot.slane %v293, %v306
    %v308 = vcombine.high %v300, %v300
    %v309 = vcombine.high %v307, %v307
    %v318 = vld [vmem:[#allocation2] sm:$0x3]
    %v319 = vadd.f32 %v283, %v318
    %v320 = vadd.f32 %v291, %v318
    %v321 = vadd.f32 %v290, %v318
    %v322 = vadd.f32 %v292, %v318
    %v323 = vadd.f32 %v300, %v318
    %v324 = vadd.f32 %v308, %v318
    %v325 = vadd.f32 %v307, %v318
    %v326 = vadd.f32 %v309, %v318
    %v327 = vmax.f32 %v319, 0.0
    %v328 = vmax.f32 %v320, 0.0
    %v329 = vmax.f32 %v321, 0.0
    %v330 = vmax.f32 %v322, 0.0
    %v331 = vmax.f32 %v323, 0.0
    %v332 = vmax.f32 %v324, 0.0
    %v333 = vmax.f32 %v325, 0.0
    %v334 = vmax.f32 %v326, 0.0
    %v335 = vld [vmem:[%s5] sm:$0xff]
    %v336 = vld [vmem:[%s5 + $0x8] sm:$0xff]
    %v337 = vld [vmem:[%s5 + $0x10] sm:$0xff]
    %v338 = vld [vmem:[%s5 + $0x18] sm:$0xff]
    %v339 = vld [vmem:[%s5 + $0x20] sm:$0xff]
    %v340 = vld [vmem:[%s5 + $0x28] sm:$0xff]
    %v341 = vld [vmem:[%s5 + $0x30] sm:$0xff]
    %v342 = vld [vmem:[%s5 + $0x38] sm:$0xff]
    %v351 = vcombine.low %v327, %v328
    %v352 = vcombine.low %v329, %v330
    %v354 = vunpack.c.l.s4 1983009808
    %v355 = vunpack.c.0.s8 %v354
    %v356 = vlaneseq
    %v357 = vshrl.u32 %v356, 7
    %v358 = vsub.s32 %v355, %v357
    %v359 = vrot.slane %v351, %v358
    %v361 = vunpack.c.l.s4 1983009808
    %v362 = vunpack.c.0.s8 %v361
    %v363 = vlaneseq
    %v364 = vshrl.u32 %v363, 7
    %v365 = vsub.s32 %v362, %v364
    %v366 = vrot.slane %v352, %v365
    %v367 = vcombine.low %v359, %v366
    %v368 = vcombine.low %v331, %v332
    %v369 = vcombine.low %v333, %v334
    %v371 = vunpack.c.l.s4 1983009808
    %v372 = vunpack.c.0.s8 %v371
    %v373 = vlaneseq
    %v374 = vshrl.u32 %v373, 7
    %v375 = vsub.s32 %v372, %v374
    %v376 = vrot.slane %v368, %v375
    %v378 = vunpack.c.l.s4 1983009808
    %v379 = vunpack.c.0.s8 %v378
    %v380 = vlaneseq
    %v381 = vshrl.u32 %v380, 7
    %v382 = vsub.s32 %v379, %v381
    %v383 = vrot.slane %v369, %v382
    %v384 = vcombine.low %v376, %v383
    %vm385 = vcmask 523264
    %v386 = vsel %vm385, %v367, 0
    %v388 = vsel %vm385, %v384, 0
    %390 = vmatprep.subr.mxu0 0.0
    %391 = vmatpush1.msra.mxu0 %v335
    %392 = vmatprep.subr.mxu0 0.0
    %393 = vmatpush1.msra.mxu0 %v336
    %394 = vmatprep.subr.mxu0 0.0
    %395 = vmatpush1.msra.mxu0 %v337
    %396 = vmatprep.subr.mxu0 0.0
    %397 = vmatpush1.msra.mxu0 %v338
    %398 = vmatprep.subr.mxu0 0.0
    %399 = vmatpush1.msra.mxu0 %v339
    %400 = vmatprep.subr.mxu0 0.0
    %401 = vmatpush1.msra.mxu0 %v340
    %402 = vmatprep.subr.mxu0 0.0
    %403 = vmatpush1.msra.mxu0 %v341
    %404 = vmatprep.subr.mxu0 0.0
    %405 = vmatpush1.msra.mxu0 %v342
    %406 = vmatprep.subr.mxu0 0.0
    %407 = vmatpush1.msra.mxu0 0.0
    %408 = vmatprep.subr.mxu0 0.0
    %409 = vmatpush1.msra.mxu0 0.0
    %410 = vmatprep.subr.mxu0 0.0
    %411 = vmatpush1.msra.mxu0 0.0
    %412 = vmatprep.subr.mxu0 0.0
    %413 = vmatpush1.msra.mxu0 0.0
    %414 = vmatprep.subr.mxu0 0.0
    %415 = vmatpush1.msra.mxu0 0.0
    %416 = vmatprep.subr.mxu0 0.0
    %417 = vmatpush1.msra.mxu0 0.0
    %418 = vmatprep.subr.mxu0 0.0
    %419 = vmatpush1.msra.mxu0 0.0
    %420 = vmatprep.subr.mxu0 0.0
    %421 = vmatpush1.msra.mxu0 0.0
    %422 = vmatprep.subr.mxu0 0.0
    %423 = vmatpush1.msra.mxu0 0.0
    %424 = vmatprep.subr.mxu0 0.0
    %425 = vmatpush1.msra.mxu0 0.0
    %426 = vmatprep.subr.mxu0 0.0
    %427 = vmatpush1.msra.mxu0 0.0
    %428 = vmatprep.subr.mxu0 0.0
    %429 = vmatpush1.msra.mxu0 0.0
    %430 = vmatprep.subr.mxu0 0.0
    %431 = vmatpush1.msra.mxu0 0.0
    %432 = vmatprep.subr.mxu0 0.0
    %433 = vmatpush1.msra.mxu0 0.0
    %434 = vmatprep.subr.mxu0 0.0
    %435 = vmatpush1.msra.mxu0 0.0
    %436 = vmatprep.subr.mxu0 0.0
    %437 = vmatpush1.msra.mxu0 0.0
    %438 = vmatprep.subr.mxu0 0.0
    %439 = vmatpush1.msra.mxu0 0.0
    %440 = vmatprep.subr.mxu0 0.0
    %441 = vmatpush1.msra.mxu0 0.0
    %442 = vmatprep.subr.mxu0 0.0
    %443 = vmatpush1.msra.mxu0 0.0
    %444 = vmatprep.subr.mxu0 0.0
    %445 = vmatpush1.msra.mxu0 0.0
    %446 = vmatprep.subr.mxu0 0.0
    %447 = vmatpush1.msra.mxu0 0.0
    %448 = vmatprep.subr.mxu0 0.0
    %449 = vmatpush1.msra.mxu0 0.0
    %450 = vmatprep.subr.mxu0 0.0
    %451 = vmatpush1.msra.mxu0 0.0
    %452 = vmatprep.subr.mxu0 0.0
    %453 = vmatpush1.msra.mxu0 0.0
    %454 = vmatprep.mubr.f32.mxu0 0.0
    %455 = vmatmul.mubr.f32.gmra.mrb[0].mxu0 %v386
    %v456 = vpop.f32.mrb[0].mxu0
    %v457 = vadd.f32 0.0, %v456
    %v458 = vpop.f32.mrb[0].mxu0
    %459 = vmatprep.mubr.f32.mxu0 0.0
    %460 = vmatmul.mubr.f32.gmra.mrb[0].mxu0 %v388
    %v461 = vpop.f32.mrb[0].mxu0
    %v462 = vadd.f32 0.0, %v461
    %v463 = vpop.f32.mrb[0].mxu0
    %464 = vdwg.mxu0
    %v467 = vcombine.high %v457, %v457
    %v469 = vunpack.c.l.s4 1983009808
    %v470 = vunpack.c.0.s8 %v469
    %v471 = vlaneseq
    %v472 = vshrl.u32 %v471, 7
    %v473 = vsub.s32 %v470, %v472
    %v474 = vrot.slane %v457, %v473
    %v476 = vunpack.c.l.s4 1983009808
    %v477 = vunpack.c.0.s8 %v476
    %v478 = vlaneseq
    %v479 = vshrl.u32 %v478, 7
    %v480 = vsub.s32 %v477, %v479
    %v481 = vrot.slane %v467, %v480
    %v482 = vcombine.high %v474, %v474
    %v483 = vcombine.high %v481, %v481
    %v484 = vcombine.high %v462, %v462
    %v486 = vunpack.c.l.s4 1983009808
    %v487 = vunpack.c.0.s8 %v486
    %v488 = vlaneseq
    %v489 = vshrl.u32 %v488, 7
    %v490 = vsub.s32 %v487, %v489
    %v491 = vrot.slane %v462, %v490
    %v493 = vunpack.c.l.s4 1983009808
    %v494 = vunpack.c.0.s8 %v493
    %v495 = vlaneseq
    %v496 = vshrl.u32 %v495, 7
    %v497 = vsub.s32 %v494, %v496
    %v498 = vrot.slane %v484, %v497
    %v499 = vcombine.high %v491, %v491
    %v500 = vcombine.high %v498, %v498
    %v509 = vld [vmem:[#allocation3] sm:$0x3]
    %vm510 = vcmask 25600
    %v511 = vsel %vm510, %v474, -inf
    %v512 = vsel %vm510, %v482, -inf
    %v513 = vsel %vm510, %v481, -inf
    %v514 = vsel %vm510, %v483, -inf
    %v515 = vsel %vm510, %v491, -inf
    %v516 = vmax.f32 %v511, %v515
    %v517 = vsel %vm510, %v499, -inf
    %v518 = vmax.f32 %v512, %v517
    %v519 = vsel %vm510, %v498, -inf
    %v520 = vmax.f32 %v513, %v519
    %v521 = vsel %vm510, %v500, -inf
    %v522 = vmax.f32 %v514, %v521
    %v523 = vmax.f32 %v516, %v518
    %v524 = vmax.f32 %v520, %v522
    %v525 = vmax.f32 %v523, %v524
    %v526 = vmax.f32 %v509, %v525
    %v527 = vsub.f32 %v509, %v526
    %v528 = vmul.f32 %v527, 1.442695
    %v529 = vpow.pop %v528
    %v530 = vsub.f32 %v474, %v526
    %v531 = vsub.f32 %v482, %v526
    %v532 = vsub.f32 %v481, %v526
    %v533 = vsub.f32 %v483, %v526
    %v534 = vsub.f32 %v491, %v526
    %v535 = vsub.f32 %v499, %v526
    %v536 = vsub.f32 %v498, %v526
    %v537 = vsub.f32 %v500, %v526
    %v538 = vmul.f32 %v530, 1.442695
    %v539 = vpow.pop %v538
    %v540 = vmul.f32 %v531, 1.442695
    %v541 = vpow.pop %v540
    %v542 = vmul.f32 %v532, 1.442695
    %v543 = vpow.pop %v542
    %v544 = vmul.f32 %v533, 1.442695
    %v545 = vpow.pop %v544
    %v546 = vmul.f32 %v534, 1.442695
    %v547 = vpow.pop %v546
    %v548 = vmul.f32 %v535, 1.442695
    %v549 = vpow.pop %v548
    %v550 = vmul.f32 %v536, 1.442695
    %v551 = vpow.pop %v550
    %v552 = vmul.f32 %v537, 1.442695
    %v553 = vpow.pop %v552
    %v554 = vld [vmem:[#allocation4] sm:$0x3]
    %v555 = vmul.f32 %v529, %v554
    %v556 = vsel %vm510, %v539, 0.0
    %v557 = vsel %vm510, %v541, 0.0
    %v558 = vadd.f32 %v556, %v557
    %v559 = vsel %vm510, %v543, 0.0
    %v560 = vadd.f32 %v558, %v559
    %v561 = vsel %vm510, %v545, 0.0
    %v562 = vadd.f32 %v560, %v561
    %v563 = vsel %vm510, %v547, 0.0
    %v564 = vadd.f32 %v562, %v563
    %v565 = vsel %vm510, %v549, 0.0
    %v566 = vadd.f32 %v564, %v565
    %v567 = vsel %vm510, %v551, 0.0
    %v568 = vadd.f32 %v566, %v567
    %v569 = vsel %vm510, %v553, 0.0
    %v570 = vadd.f32 %v568, %v569
    %v571 = vadd.f32 %v555, %v570
    %572 = vst.msk [vmem:[#allocation4] sm:$0x3] %vm510, %v571
    %573 = vst.msk [vmem:[#allocation3] sm:$0x3] %vm510, %v526
    %v574 = vld [vmem:[%s6] sm:$0xf]
    %v583 = vcombine.low %v539, %v541
    %v584 = vcombine.low %v543, %v545
    %v586 = vunpack.c.l.s4 1983009808
    %v587 = vunpack.c.0.s8 %v586
    %v588 = vlaneseq
    %v589 = vshrl.u32 %v588, 7
    %v590 = vsub.s32 %v587, %v589
    %v591 = vrot.slane %v583, %v590
    %v593 = vunpack.c.l.s4 1983009808
    %v594 = vunpack.c.0.s8 %v593
    %v595 = vlaneseq
    %v596 = vshrl.u32 %v595, 7
    %v597 = vsub.s32 %v594, %v596
    %v598 = vrot.slane %v584, %v597
    %v599 = vcombine.low %v591, %v598
    %v600 = vcombine.low %v547, %v549
    %v601 = vcombine.low %v551, %v553
    %v603 = vunpack.c.l.s4 1983009808
    %v604 = vunpack.c.0.s8 %v603
    %v605 = vlaneseq
    %v606 = vshrl.u32 %v605, 7
    %v607 = vsub.s32 %v604, %v606
    %v608 = vrot.slane %v600, %v607
    %v610 = vunpack.c.l.s4 1983009808
    %v611 = vunpack.c.0.s8 %v610
    %v612 = vlaneseq
    %v613 = vshrl.u32 %v612, 7
    %v614 = vsub.s32 %v611, %v613
    %v615 = vrot.slane %v601, %v614
    %v616 = vcombine.low %v608, %v615
    %vm617 = vcmask 31744
    %v618 = vsel %vm617, %v599, 0
    %v620 = vsel %vm617, %v616, 0
    %vm622 = vcmask 1043456
    %v624 = vsel %vm622, %v574, 0
    %626 = vmatprep.subr.mxu0 0.0
    %627 = vmatpush1.msra.mxu0 %v624
    %628 = vmatprep.subr.mxu0 0.0
    %629 = vmatpush1.msra.mxu0 0.0
    %630 = vmatprep.subr.mxu0 0.0
    %631 = vmatpush1.msra.mxu0 0.0
    %632 = vmatprep.subr.mxu0 0.0
    %633 = vmatpush1.msra.mxu0 0.0
    %634 = vmatprep.subr.mxu0 0.0
    %635 = vmatpush1.msra.mxu0 0.0
    %636 = vmatprep.subr.mxu0 0.0
    %637 = vmatpush1.msra.mxu0 0.0
    %638 = vmatprep.subr.mxu0 0.0
    %639 = vmatpush1.msra.mxu0 0.0
    %640 = vmatprep.subr.mxu0 0.0
    %641 = vmatpush1.msra.mxu0 0.0
    %642 = vmatprep.subr.mxu0 0.0
    %643 = vmatpush1.msra.mxu0 0.0
    %644 = vmatprep.subr.mxu0 0.0
    %645 = vmatpush1.msra.mxu0 0.0
    %646 = vmatprep.subr.mxu0 0.0
    %647 = vmatpush1.msra.mxu0 0.0
    %648 = vmatprep.subr.mxu0 0.0
    %649 = vmatpush1.msra.mxu0 0.0
    %650 = vmatprep.subr.mxu0 0.0
    %651 = vmatpush1.msra.mxu0 0.0
    %652 = vmatprep.subr.mxu0 0.0
    %653 = vmatpush1.msra.mxu0 0.0
    %654 = vmatprep.subr.mxu0 0.0
    %655 = vmatpush1.msra.mxu0 0.0
    %656 = vmatprep.subr.mxu0 0.0
    %657 = vmatpush1.msra.mxu0 0.0
    %658 = vmatprep.subr.mxu0 0.0
    %659 = vmatpush1.msra.mxu0 0.0
    %660 = vmatprep.subr.mxu0 0.0
    %661 = vmatpush1.msra.mxu0 0.0
    %662 = vmatprep.subr.mxu0 0.0
    %663 = vmatpush1.msra.mxu0 0.0
    %664 = vmatprep.subr.mxu0 0.0
    %665 = vmatpush1.msra.mxu0 0.0
    %666 = vmatprep.subr.mxu0 0.0
    %667 = vmatpush1.msra.mxu0 0.0
    %668 = vmatprep.subr.mxu0 0.0
    %669 = vmatpush1.msra.mxu0 0.0
    %670 = vmatprep.subr.mxu0 0.0
    %671 = vmatpush1.msra.mxu0 0.0
    %672 = vmatprep.subr.mxu0 0.0
    %673 = vmatpush1.msra.mxu0 0.0
    %674 = vmatprep.subr.mxu0 0.0
    %675 = vmatpush1.msra.mxu0 0.0
    %676 = vmatprep.subr.mxu0 0.0
    %677 = vmatpush1.msra.mxu0 0.0
    %678 = vmatprep.subr.mxu0 0.0
    %679 = vmatpush1.msra.mxu0 0.0
    %680 = vmatprep.subr.mxu0 0.0
    %681 = vmatpush1.msra.mxu0 0.0
    %682 = vmatprep.subr.mxu0 0.0
    %683 = vmatpush1.msra.mxu0 0.0
    %684 = vmatprep.subr.mxu0 0.0
    %685 = vmatpush1.msra.mxu0 0.0
    %686 = vmatprep.subr.mxu0 0.0
    %687 = vmatpush1.msra.mxu0 0.0
    %688 = vmatprep.subr.mxu0 0.0
    %689 = vmatpush1.msra.mxu0 0.0
    %690 = vmatprep.mubr.f32.mxu0 0.0
    %691 = vmatmul.mubr.f32.gmra.mrb[0].mxu0 %v618
    %v692 = vpop.f32.mrb[0].mxu0
    %v693 = vadd.f32 0.0, %v692
    %v694 = vpop.f32.mrb[0].mxu0
    %695 = vmatprep.mubr.f32.mxu0 0.0
    %696 = vmatmul.mubr.f32.gmra.mrb[0].mxu0 %v620
    %v697 = vpop.f32.mrb[0].mxu0
    %v698 = vadd.f32 0.0, %v697
    %v699 = vpop.f32.mrb[0].mxu0
    %700 = vdwg.mxu0
    %v703 = vcombine.high %v693, %v693
    %v705 = vunpack.c.l.s4 1983009808
    %v706 = vunpack.c.0.s8 %v705
    %v707 = vlaneseq
    %v708 = vshrl.u32 %v707, 7
    %v709 = vsub.s32 %v706, %v708
    %v710 = vrot.slane %v693, %v709
    %v712 = vunpack.c.l.s4 1983009808
    %v713 = vunpack.c.0.s8 %v712
    %v714 = vlaneseq
    %v715 = vshrl.u32 %v714, 7
    %v716 = vsub.s32 %v713, %v715
    %v717 = vrot.slane %v703, %v716
    %v718 = vcombine.high %v710, %v710
    %v719 = vcombine.high %v717, %v717
    %v720 = vcombine.high %v698, %v698
    %v722 = vunpack.c.l.s4 1983009808
    %v723 = vunpack.c.0.s8 %v722
    %v724 = vlaneseq
    %v725 = vshrl.u32 %v724, 7
    %v726 = vsub.s32 %v723, %v725
    %v727 = vrot.slane %v698, %v726
    %v729 = vunpack.c.l.s4 1983009808
    %v730 = vunpack.c.0.s8 %v729
    %v731 = vlaneseq
    %v732 = vshrl.u32 %v731, 7
    %v733 = vsub.s32 %v730, %v732
    %v734 = vrot.slane %v720, %v733
    %v735 = vcombine.high %v727, %v727
    %v736 = vcombine.high %v734, %v734
    %v746 = vsel %vm617, %v529, 0
    %748 = vmatprep.subr.mxu0 0.0
    %749 = vmatpush1.msra.mxu0 %v624
    %750 = vmatprep.subr.mxu0 0.0
    %751 = vmatpush1.msra.mxu0 0.0
    %752 = vmatprep.subr.mxu0 0.0
    %753 = vmatpush1.msra.mxu0 0.0
    %754 = vmatprep.subr.mxu0 0.0
    %755 = vmatpush1.msra.mxu0 0.0
    %756 = vmatprep.subr.mxu0 0.0
    %757 = vmatpush1.msra.mxu0 0.0
    %758 = vmatprep.subr.mxu0 0.0
    %759 = vmatpush1.msra.mxu0 0.0
    %760 = vmatprep.subr.mxu0 0.0
    %761 = vmatpush1.msra.mxu0 0.0
    %762 = vmatprep.subr.mxu0 0.0
    %763 = vmatpush1.msra.mxu0 0.0
    %764 = vmatprep.subr.mxu0 0.0
    %765 = vmatpush1.msra.mxu0 0.0
    %766 = vmatprep.subr.mxu0 0.0
    %767 = vmatpush1.msra.mxu0 0.0
    %768 = vmatprep.subr.mxu0 0.0
    %769 = vmatpush1.msra.mxu0 0.0
    %770 = vmatprep.subr.mxu0 0.0
    %771 = vmatpush1.msra.mxu0 0.0
    %772 = vmatprep.subr.mxu0 0.0
    %773 = vmatpush1.msra.mxu0 0.0
    %774 = vmatprep.subr.mxu0 0.0
    %775 = vmatpush1.msra.mxu0 0.0
    %776 = vmatprep.subr.mxu0 0.0
    %777 = vmatpush1.msra.mxu0 0.0
    %778 = vmatprep.subr.mxu0 0.0
    %779 = vmatpush1.msra.mxu0 0.0
    %780 = vmatprep.subr.mxu0 0.0
    %781 = vmatpush1.msra.mxu0 0.0
    %782 = vmatprep.subr.mxu0 0.0
    %783 = vmatpush1.msra.mxu0 0.0
    %784 = vmatprep.subr.mxu0 0.0
    %785 = vmatpush1.msra.mxu0 0.0
    %786 = vmatprep.subr.mxu0 0.0
    %787 = vmatpush1.msra.mxu0 0.0
    %788 = vmatprep.subr.mxu0 0.0
    %789 = vmatpush1.msra.mxu0 0.0
    %790 = vmatprep.subr.mxu0 0.0
    %791 = vmatpush1.msra.mxu0 0.0
    %792 = vmatprep.subr.mxu0 0.0
    %793 = vmatpush1.msra.mxu0 0.0
    %794 = vmatprep.subr.mxu0 0.0
    %795 = vmatpush1.msra.mxu0 0.0
    %796 = vmatprep.subr.mxu0 0.0
    %797 = vmatpush1.msra.mxu0 0.0
    %798 = vmatprep.subr.mxu0 0.0
    %799 = vmatpush1.msra.mxu0 0.0
    %800 = vmatprep.subr.mxu0 0.0
    %801 = vmatpush1.msra.mxu0 0.0
    %802 = vmatprep.subr.mxu0 0.0
    %803 = vmatpush1.msra.mxu0 0.0
    %804 = vmatprep.subr.mxu0 0.0
    %805 = vmatpush1.msra.mxu0 0.0
    %806 = vmatprep.subr.mxu0 0.0
    %807 = vmatpush1.msra.mxu0 0.0
    %808 = vmatprep.subr.mxu0 0.0
    %809 = vmatpush1.msra.mxu0 0.0
    %810 = vmatprep.subr.mxu0 0.0
    %811 = vmatpush1.msra.mxu0 0.0
    %812 = vmatprep.mubr.f32.mxu0 0.0
    %813 = vmatmul.mubr.f32.gmra.mrb[0].mxu0 %v746
    %v814 = vpop.f32.mrb[0].mxu0
    %v815 = vadd.f32 0.0, %v814
    %v816 = vpop.f32.mrb[0].mxu0
    %817 = vdwg.mxu0
    %v818 = vld [vmem:[#allocation5] sm:$0x3]
    %v819 = vmul.f32 %v815, %v818
    %v820 = vmul.f32 %v710, %v131
    %v821 = vmul.f32 %v718, %v132
    %v822 = vmul.f32 %v717, %v133
    %v823 = vmul.f32 %v719, %v134
    %v824 = vmul.f32 %v727, %v135
    %v825 = vmul.f32 %v735, %v136
    %v826 = vmul.f32 %v734, %v137
    %v827 = vmul.f32 %v736, %v138
    %vm828 = vcmask 1041408
    %v829 = vsel %vm828, %v820, 0.0
    %v830 = vsel %vm828, %v821, 0.0
    %v831 = vadd.f32 %v829, %v830
    %v832 = vsel %vm828, %v822, 0.0
    %v833 = vadd.f32 %v831, %v832
    %v834 = vsel %vm828, %v823, 0.0
    %v835 = vadd.f32 %v833, %v834
    %v836 = vsel %vm828, %v824, 0.0
    %v837 = vadd.f32 %v835, %v836
    %v838 = vsel %vm828, %v825, 0.0
    %v839 = vadd.f32 %v837, %v838
    %v840 = vsel %vm828, %v826, 0.0
    %v841 = vadd.f32 %v839, %v840
    %v842 = vsel %vm828, %v827, 0.0
    %v843 = vadd.f32 %v841, %v842
    %v844 = vadd.f32 %v819, %v843
    %845 = vst [vmem:[#allocation5] sm:$0x3] %v844
    // Predicated region
    $region34: #{tpu_custom_call.1} parent=1 // pred_check
      %p846 = pneg %p27
    $region35: #{tpu_custom_call.1} parent=1 // pred_check_branch
      %848 = sbr.rel (%p846) target = $region37
    $region36: #{tpu_custom_call.1} parent=1 // pred_region
      %v849 = vld [vmem:[#allocation4] sm:$0x3]
      %v850 = vrcp.pop %v849
      %v851 = vmul.f32 1.0, %v850
      %v852 = vld [vmem:[%s6] sm:$0xf]
      %v854 = vsel %vm617, %v851, 0
      %v857 = vsel %vm622, %v852, 0
      %859 = vmatprep.subr.mxu0 0.0
      %860 = vmatpush1.msra.mxu0 %v857
      %861 = vmatprep.subr.mxu0 0.0
      %862 = vmatpush1.msra.mxu0 0.0
      %863 = vmatprep.subr.mxu0 0.0
      %864 = vmatpush1.msra.mxu0 0.0
      %865 = vmatprep.subr.mxu0 0.0
      %866 = vmatpush1.msra.mxu0 0.0
      %867 = vmatprep.subr.mxu0 0.0
      %868 = vmatpush1.msra.mxu0 0.0
      %869 = vmatprep.subr.mxu0 0.0
      %870 = vmatpush1.msra.mxu0 0.0
      %871 = vmatprep.subr.mxu0 0.0
      %872 = vmatpush1.msra.mxu0 0.0
      %873 = vmatprep.subr.mxu0 0.0
      %874 = vmatpush1.msra.mxu0 0.0
      %875 = vmatprep.subr.mxu0 0.0
      %876 = vmatpush1.msra.mxu0 0.0
      %877 = vmatprep.subr.mxu0 0.0
      %878 = vmatpush1.msra.mxu0 0.0
      %879 = vmatprep.subr.mxu0 0.0
      %880 = vmatpush1.msra.mxu0 0.0
      %881 = vmatprep.subr.mxu0 0.0
      %882 = vmatpush1.msra.mxu0 0.0
      %883 = vmatprep.subr.mxu0 0.0
      %884 = vmatpush1.msra.mxu0 0.0
      %885 = vmatprep.subr.mxu0 0.0
      %886 = vmatpush1.msra.mxu0 0.0
      %887 = vmatprep.subr.mxu0 0.0
      %888 = vmatpush1.msra.mxu0 0.0
      %889 = vmatprep.subr.mxu0 0.0
      %890 = vmatpush1.msra.mxu0 0.0
      %891 = vmatprep.subr.mxu0 0.0
      %892 = vmatpush1.msra.mxu0 0.0
      %893 = vmatprep.subr.mxu0 0.0
      %894 = vmatpush1.msra.mxu0 0.0
      %895 = vmatprep.subr.mxu0 0.0
      %896 = vmatpush1.msra.mxu0 0.0
      %897 = vmatprep.subr.mxu0 0.0
      %898 = vmatpush1.msra.mxu0 0.0
      %899 = vmatprep.subr.mxu0 0.0
      %900 = vmatpush1.msra.mxu0 0.0
      %901 = vmatprep.subr.mxu0 0.0
      %902 = vmatpush1.msra.mxu0 0.0
      %903 = vmatprep.subr.mxu0 0.0
      %904 = vmatpush1.msra.mxu0 0.0
      %905 = vmatprep.subr.mxu0 0.0
      %906 = vmatpush1.msra.mxu0 0.0
      %907 = vmatprep.subr.mxu0 0.0
      %908 = vmatpush1.msra.mxu0 0.0
      %909 = vmatprep.subr.mxu0 0.0
      %910 = vmatpush1.msra.mxu0 0.0
      %911 = vmatprep.subr.mxu0 0.0
      %912 = vmatpush1.msra.mxu0 0.0
      %913 = vmatprep.subr.mxu0 0.0
      %914 = vmatpush1.msra.mxu0 0.0
      %915 = vmatprep.subr.mxu0 0.0
      %916 = vmatpush1.msra.mxu0 0.0
      %917 = vmatprep.subr.mxu0 0.0
      %918 = vmatpush1.msra.mxu0 0.0
      %919 = vmatprep.subr.mxu0 0.0
      %920 = vmatpush1.msra.mxu0 0.0
      %921 = vmatprep.subr.mxu0 0.0
      %922 = vmatpush1.msra.mxu0 0.0
      %923 = vmatprep.mubr.f32.mxu0 0.0
      %924 = vmatmul.mubr.f32.gmra.mrb[0].mxu0 %v854
      %v925 = vpop.f32.mrb[0].mxu0
      %v926 = vadd.f32 0.0, %v925
      %v927 = vpop.f32.mrb[0].mxu0
      %928 = vdwg.mxu0
      %v929 = vld [vmem:[#allocation5] sm:$0x3]
      %v930 = vmul.f32 %v929, %v926
      %931 = vst [vmem:[#allocation6] sm:$0x3] %v930
    $region37: #{tpu_custom_call.1} parent=1 // pred_fallthru
      _
    // Predicated region
    $region38: #{tpu_custom_call.1} parent=1 // pred_check
      _
    $region39: #{tpu_custom_call.1} parent=1 // pred_check_branch
      %933 = sbr.rel (0) target = $region41
    $region40: #{tpu_custom_call.1} parent=1 // pred_region
      %s935 = ssub.s32 32, 32
      %936 = vsyncadd [#allocation7], %s935
      %s938 = sshll.u32 [#allocation6], 4
      %s939 = int_to_ptr.vmem [resolvable:$true] %s938
      %941 = dma.vmem_to_hbm [thread:$0]  %s939, 32, %s7, [#allocation7]
    $region41: #{tpu_custom_call.1} parent=1 // pred_fallthru
      _
    // Predicated region
    $region42: #{tpu_custom_call.1} parent=1 // pred_check
      _
    $region43: #{tpu_custom_call.1} parent=1 // pred_check_branch
      %943 = sbr.rel (0) target = $region45
    $region44: #{tpu_custom_call.1} parent=1 // pred_region
      %944 = dma.done [#allocation7], 32
    $region45: #{tpu_custom_call.1} parent=1 // pred_fallthru
      _
    %945 = vsyncpa [#allocation7], 1

</llo_original>
